<compile_context>
chip_gen: v7x
topology: tpu7x:2x2x1
jax: 0.10.0
libtpu: 0.0.40
codegen_flags: <defaults>
</compile_context>

<pallas_src>
import functools

import jax
import jax.numpy as jnp
from jax import lax
from jax.experimental import pallas as pl
from jax.experimental.pallas import tpu as pltpu


def _avgmax_channel_attn_kernel(x_ref, w_ref, b_ref, o_ref, *, inv_hw):
    # x_ref : VMEM (Bn, C, H*W)   input block (lane-dense spatial axis)
    # w_ref : VMEM (C, C)         conv weight, pre-transposed to (C_in, C_out)
    # b_ref : VMEM (1, C)         conv bias
    # o_ref : VMEM (Bn, C)        channel-attention logits for this batch block
    xf = x_ref[...].astype(jnp.float32)                       # (Bn, C, HW)
    pooled = jnp.sum(xf, axis=-1) * inv_hw + jnp.max(xf, axis=-1)   # avg + max, (Bn, C)
    out = jnp.dot(pooled, w_ref[...], preferred_element_type=jnp.float32)  # (Bn, C)
    out = out + b_ref[...]                                    # broadcast (1, C)
    o_ref[...] = out.astype(o_ref.dtype)


def _pick_block_n(N, C, HW, itemsize, budget_bytes=24 * 1024 * 1024):
    """Batch-block size: largest Bn whose double-buffered input block fits the
    VMEM budget.  Bn must equal N, or be a multiple of 8 that divides N, so the
    (Bn, C) output block satisfies the (8, 128) tiling rule and the grid is exact."""
    per_n = 2 * C * HW * itemsize          # double-buffered input bytes per batch elem
    bn = max(1, budget_bytes // per_n)
    if bn >= N:
        return N
    bn = (bn // 8) * 8
    while bn >= 8:
        if N % bn == 0:
            return bn
        bn -= 8
    return N                               # fallback: whole batch in one step


def avg_max_channel_attention_2d(x, weight, bias):
    """x: (N, C, H, W); weight: (C, C, 1, 1); bias: (C,) -> (N, C, 1, 1)."""
    N, C, H, W = x.shape
    HW = H * W
    itemsize = jnp.dtype(x.dtype).itemsize

    x_flat = x.reshape(N, C, HW)                              # lane-dense last dim
    w_t = weight.reshape(C, C).T.astype(jnp.float32)          # (C_in, C_out)
    b = bias.reshape(1, C).astype(jnp.float32)

    bn = _pick_block_n(N, C, HW, itemsize)
    grid = (N // bn,)

    kernel = functools.partial(_avgmax_channel_attn_kernel, inv_hw=float(1.0 / HW))

    cost = pl.CostEstimate(
        flops=int(3 * N * C * HW + 2 * N * C * C),            # sum+max reductions + 1x1 conv
        transcendentals=0,
        bytes_accessed=int(N * C * HW * itemsize + C * C * 4 + C * 4 + N * C * itemsize),
    )

    out2d = pl.pallas_call(
        kernel,
        out_shape=jax.ShapeDtypeStruct((N, C), x.dtype),
        grid=grid,
        in_specs=[
            pl.BlockSpec((bn, C, HW), lambda n: (n, 0, 0)),   # x block, streams over batch
            pl.BlockSpec((C, C), lambda n: (0, 0)),           # weight, resident across grid
            pl.BlockSpec((1, C), lambda n: (0, 0)),           # bias, resident across grid
        ],
        out_specs=pl.BlockSpec((bn, C), lambda n: (n, 0)),
        compiler_params=pltpu.CompilerParams(
            dimension_semantics=("parallel",),                # v7x: 2 TCs shard the batch
            vmem_limit_bytes=48 * 1024 * 1024,                # headroom for larger blocks; <= v7x physical
        ),
        cost_estimate=cost,
    )(x_flat, w_t, b)

    return out2d.reshape(N, C, 1, 1)


def _reference(x, weight, bias):
    """Pure-JAX reference mirroring the PyTorch forward."""
    avg = jnp.mean(x, axis=(2, 3), keepdims=True)             # AdaptiveAvgPool2d(1)
    mx = jnp.max(x, axis=(2, 3), keepdims=True)               # AdaptiveMaxPool2d(1)
    s = avg + mx                                              # (N, C, 1, 1)
    y = lax.conv_general_dilated(
        s, weight, window_strides=(1, 1), padding=((0, 0), (0, 0)),
        dimension_numbers=("NCHW", "OIHW", "NCHW"))
    return y + bias.reshape(1, -1, 1, 1)


if __name__ == "__main__":
    key = jax.random.PRNGKey(0)
    kx, kw, kb = jax.random.split(key, 3)

    N, C, H, W = 2, 4, 16, 16
    x = jax.random.normal(kx, (N, C, H, W), dtype=jnp.float32)

    # Deterministic Conv2d(C, C, kernel_size=1, bias=True) params, init scheme
    # mirroring PyTorch's uniform(-1/sqrt(fan_in), 1/sqrt(fan_in)).
    fan_in = C * 1 * 1
    bound = 1.0 / (fan_in ** 0.5)
    weight = jax.random.uniform(kw, (C, C, 1, 1), jnp.float32, -bound, bound)
    bias = jax.random.uniform(kb, (C,), jnp.float32, -bound, bound)

    out = avg_max_channel_attention_2d(x, weight, bias)
    out = jax.block_until_ready(out)

    ref = _reference(x, weight, bias)
    assert out.shape == (N, C, 1, 1), out.shape
    max_err = float(jnp.max(jnp.abs(out - ref)))
    assert jnp.allclose(out, ref, atol=1e-5, rtol=1e-5), max_err

    print("KERNEL_OK")
</pallas_src>

<mosaic_0001>
module attributes {stable_mosaic.version = 11 : i64} {
  func.func @_avgmax_channel_attn_kernel(%arg0: i32, %arg1: memref<2x4x256xf32, #tpu.memory_space<vmem>>, %arg2: memref<4x4xf32, #tpu.memory_space<vmem>>, %arg3: memref<1x4xf32, #tpu.memory_space<vmem>>, %arg4: memref<2x4xf32, #tpu.memory_space<vmem>>) attributes {dimension_semantics = [#tpu.dimension_semantics<parallel>], iteration_bounds = array<i64: 1>, scalar_prefetch = 0 : i64, scratch_operands = 0 : i64, tpu.core_type = #tpu.core_type<tc>, window_params = [{transform_indices = @transform_0, window_bounds = array<i64: 2, 4, 256>}, {pipeline_mode = #tpu.pipeline_mode<synchronous>, transform_indices = @transform_1, window_bounds = array<i64: 4, 4>}, {pipeline_mode = #tpu.pipeline_mode<synchronous>, transform_indices = @transform_2, window_bounds = array<i64: 1, 4>}, {transform_indices = @transform_3, window_bounds = array<i64: 2, 4>}]} {
    %c0 = arith.constant 0 : index
    %c0_0 = arith.constant 0 : index
    %c0_1 = arith.constant 0 : index
    %0 = vector.load %arg1[%c0, %c0_0, %c0_1] : memref<2x4x256xf32, #tpu.memory_space<vmem>>, vector<2x4x256xf32>
    %cst = arith.constant dense<0.000000e+00> : vector<2x4xf32>
    %1 = vector.multi_reduction <add>, %0, %cst [2] : vector<2x4x256xf32> to vector<2x4xf32>
    %cst_2 = arith.constant 3.906250e-03 : f32
    %2 = vector.broadcast %cst_2 : f32 to vector<2x4xf32>
    %3 = arith.mulf %1, %2 : vector<2x4xf32>
    %cst_3 = arith.constant dense<0xFF800000> : vector<2x4xf32>
    %4 = vector.multi_reduction <maximumf>, %0, %cst_3 [2] : vector<2x4x256xf32> to vector<2x4xf32>
    %5 = arith.addf %3, %4 : vector<2x4xf32>
    %c0_4 = arith.constant 0 : index
    %c0_5 = arith.constant 0 : index
    %6 = vector.load %arg2[%c0_4, %c0_5] : memref<4x4xf32, #tpu.memory_space<vmem>>, vector<4x4xf32>
    %cst_6 = arith.constant dense<0.000000e+00> : vector<2x4xf32>
    %7 = tpu.matmul %5, %6, %cst_6 {dimension_numbers = #tpu.dot_dimension_numbers<[1], [0], [0], [1], [0, 0, 1, 1], [], []>} : vector<2x4xf32>, vector<4x4xf32>, vector<2x4xf32> -> vector<2x4xf32>
    %c0_7 = arith.constant 0 : index
    %c0_8 = arith.constant 0 : index
    %8 = vector.load %arg3[%c0_7, %c0_8] : memref<1x4xf32, #tpu.memory_space<vmem>>, vector<1x4xf32>
    %9 = vector.broadcast %8 : vector<1x4xf32> to vector<2x4xf32>
    %10 = arith.addf %7, %9 : vector<2x4xf32>
    %c0_9 = arith.constant 0 : index
    %c0_10 = arith.constant 0 : index
    %11 = vector.load %arg4[%c0_9, %c0_10] : memref<2x4xf32, #tpu.memory_space<vmem>>, vector<2x4xf32>
    tpu.vector_store %arg4[%c0_9, %c0_10], %10 {strides = array<i32>} : memref<2x4xf32, #tpu.memory_space<vmem>>, vector<2x4xf32>,
    return
  }
  func.func @transform_0(%arg0: i32) -> (i32, i32, i32) {
    %c0_i32 = arith.constant 0 : i32
    %c0_i32_0 = arith.constant 0 : i32
    %c0_i32_1 = arith.constant 0 : i32
    return %arg0, %c0_i32, %c0_i32_0 : i32, i32, i32
  }
  func.func @transform_1(%arg0: i32) -> (i32, i32) {
    %c0_i32 = arith.constant 0 : i32
    %c0_i32_0 = arith.constant 0 : i32
    %c0_i32_1 = arith.constant 0 : i32
    return %c0_i32, %c0_i32_0 : i32, i32
  }
  func.func @transform_2(%arg0: i32) -> (i32, i32) {
    %c0_i32 = arith.constant 0 : i32
    %c0_i32_0 = arith.constant 0 : i32
    %c0_i32_1 = arith.constant 0 : i32
    return %c0_i32, %c0_i32_0 : i32, i32
  }
  func.func @transform_3(%arg0: i32) -> (i32, i32) {
    %c0_i32 = arith.constant 0 : i32
    %c0_i32_0 = arith.constant 0 : i32
    return %arg0, %c0_i32 : i32, i32
  }
}

</mosaic_0001>

<llo_original>
// kernel: tpu_custom_call.1
$region0: #{tpu_custom_call.1}
  #allocation0 [shape = 'u32[]', space=smem, size = 0x4, offset = 0x4, fixed_abs, tag = 'smem constant byte address 0x4 - core index']
  #allocation1 [shape = 'u32[144,128]{1,0:T(1,128)}', space=vmem, size = 0x12000, scoped, tag = 'internal scratch']
  %s0 = inlined_call_operand.hbm [shape: f32[2,4,256], index: 0, kind: input, shape index: {}]
  %s1 = inlined_call_operand.hbm [shape: f32[4,4], index: 1, kind: input, shape index: {}]
  %s2 = inlined_call_operand.vmem [shape: f32[1,4], index: 2, kind: input, shape index: {}]
  %s3 = inlined_call_operand.hbm [shape: f32[2,4], index: 3, kind: output, shape index: {}]
  %s4 = sld [smem:[#allocation0]]
  $region30: #{tpu_custom_call.1} parent=0
    _
  %s6 = ssub.s32 1, %s4
  %s7 = scalar_select 0, %s6, %s4
  $region1: #{tpu_custom_call.1} parent=0
    #allocation2 [shape = 'u8[8192]{0}', space=vmem, size = 0x2000, scoped, tag = 'input window, operand 0, single buffered']
    #allocation3 [shape = 's32[1]{0}', space=sflag, size = 0x4, scoped, tag = 'scoped memory for tpu_custom_call.1']
    #allocation4 [shape = 's32[1]{0}', space=sflag, size = 0x4, scoped, tag = 'scoped memory for tpu_custom_call.1']
    #allocation5 [shape = 'u8[2048]{0}', space=vmem, size = 0x800, scoped, tag = 'input window, operand 1, single buffered']
    #allocation6 [shape = 's32[1]{0}', space=sflag, size = 0x4, scoped, tag = 'scoped memory for tpu_custom_call.1']
    #allocation7 [shape = 'u8[1024]{0}', space=vmem, size = 0x400, scoped, tag = 'output window, operand 0, single buffered']
    %8 = vsyncpa [#allocation3], 0
    %9 = vsyncpa [#allocation6], 0
    %10 = vsyncpa [#allocation4], 0
    // Predicated region
    $region2: #{tpu_custom_call.1} parent=1 // pred_check
      _
    $region3: #{tpu_custom_call.1} parent=1 // pred_check_branch
      %12 = sbr.rel (0) target = $region5
    $region4: #{tpu_custom_call.1} parent=1 // pred_region
      %s14 = ssub.s32 256, 256
      %15 = vsyncadd [#allocation3], %s14
      %s16 = sshll.u32 [#allocation2], 4
      %s17 = int_to_ptr.vmem [resolvable:$true] %s16
      %22 = dma.hbm_to_vmem [thread:$0]  %s0, 256, %s17, [#allocation3], 128, 128, 8
    $region5: #{tpu_custom_call.1} parent=1 // pred_fallthru
      _
    // Predicated region
    $region6: #{tpu_custom_call.1} parent=1 // pred_check
      _
    $region7: #{tpu_custom_call.1} parent=1 // pred_check_branch
      %24 = sbr.rel (0) target = $region9
    $region8: #{tpu_custom_call.1} parent=1 // pred_region
      %s26 = ssub.s32 64, 64
      %27 = vsyncadd [#allocation6], %s26
      %s29 = sshll.u32 [#allocation5], 4
      %s30 = int_to_ptr.vmem [resolvable:$true] %s29
      %32 = dma.hbm_to_vmem [thread:$0]  %s1, 64, %s30, [#allocation6]
    $region9: #{tpu_custom_call.1} parent=1 // pred_fallthru
      _
    // Predicated region
    $region10: #{tpu_custom_call.1} parent=1 // pred_check
      _
    $region11: #{tpu_custom_call.1} parent=1 // pred_check_branch
      %34 = sbr.rel (0) target = $region13
    $region12: #{tpu_custom_call.1} parent=1 // pred_region
      _
    $region13: #{tpu_custom_call.1} parent=1 // pred_fallthru
      _
    // Predicated region
    $region14: #{tpu_custom_call.1} parent=1 // pred_check
      _
    $region15: #{tpu_custom_call.1} parent=1 // pred_check_branch
      %36 = sbr.rel (0) target = $region17
    $region16: #{tpu_custom_call.1} parent=1 // pred_region
      %37 = dma.done [#allocation3], 256
    $region17: #{tpu_custom_call.1} parent=1 // pred_fallthru
      _
    // Predicated region
    $region18: #{tpu_custom_call.1} parent=1 // pred_check
      _
    $region19: #{tpu_custom_call.1} parent=1 // pred_check_branch
      %39 = sbr.rel (0) target = $region21
    $region20: #{tpu_custom_call.1} parent=1 // pred_region
      %40 = dma.done [#allocation6], 64
    $region21: #{tpu_custom_call.1} parent=1 // pred_fallthru
      _
    %v41 = vld [vmem:[#allocation2] sm:$0xff]
    %v42 = vld [vmem:[#allocation2 + $0x8] sm:$0xff]
    %v45 = vcombine.high %v41, %v41
    %v46 = vcombine.high %v42, %v42
    %vm49 = vcmask 1043456
    %v50 = vsel %vm49, %v41, 0.0
    %v51 = vsel %vm49, %v45, 0.0
    %v52 = vadd.f32 %v50, %v51
    %53 = vadd.xlane.f32.xlu0 %v52
    %v54 = vpop.xlane.xlu0 %53
    %v55 = vsel %vm49, %v42, 0.0
    %v56 = vsel %vm49, %v46, 0.0
    %v57 = vadd.f32 %v55, %v56
    %58 = vadd.xlane.f32.xlu0 %v57
    %v59 = vpop.xlane.xlu0 %58
    %v60 = vmul.f32 %v54, 0.00390625
    %v61 = vmul.f32 %v59, 0.00390625
    %v62 = vsel %vm49, %v41, -inf
    %v63 = vsel %vm49, %v45, -inf
    %v64 = vmax.f32 %v62, %v63
    %65 = vmax.xlane.f32.xlu0 %v64
    %v66 = vpop.xlane.xlu0 %65
    %v67 = vsel %vm49, %v42, -inf
    %v68 = vsel %vm49, %v46, -inf
    %v69 = vmax.f32 %v67, %v68
    %70 = vmax.xlane.f32.xlu0 %v69
    %v71 = vpop.xlane.xlu0 %70
    %v72 = vadd.f32 %v60, %v66
    %v73 = vadd.f32 %v61, %v71
    %v74 = vld [vmem:[#allocation5] sm:$0xf]
    %v75 = vld [vmem:[%s2] sm:$0x1]
    %v77 = vlaneseq
    %v78 = vshrl.u32 %v77, 7
    %v79 = vsub.s32 0, %v78
    %v80 = vrot.slane %v75, %v79
    %v84 = vlaneseq
    %v85 = vand.u32 %v84, 127
    %v86 = vlaneseq
    %v87 = vshrl.u32 %v86, 7
    %v88 = vsub.s32 %v85, %v87
    %v89 = vrot.slane %v72, %v88
    %v90 = vlaneseq
    %v91 = vshrl.u32 %v90, 7
    %v92 = vsub.s32 %v85, %v91
    %v93 = vrot.slane %v73, %v92
    %vm94 = vcmask 1041409
    %v95 = vsel %vm94, %v93, %v89
    %vm96 = vcmask 31744
    %v97 = vsel %vm96, %v95, 0
    %v100 = vsel %vm49, %v74, 0
    %102 = vmatprep.subr.mxu0 0.0
    %103 = vmatpush1.msra.mxu0 %v100
    %104 = vmatprep.subr.mxu0 0.0
    %105 = vmatpush1.msra.mxu0 0.0
    %106 = vmatprep.subr.mxu0 0.0
    %107 = vmatpush1.msra.mxu0 0.0
    %108 = vmatprep.subr.mxu0 0.0
    %109 = vmatpush1.msra.mxu0 0.0
    %110 = vmatprep.subr.mxu0 0.0
    %111 = vmatpush1.msra.mxu0 0.0
    %112 = vmatprep.subr.mxu0 0.0
    %113 = vmatpush1.msra.mxu0 0.0
    %114 = vmatprep.subr.mxu0 0.0
    %115 = vmatpush1.msra.mxu0 0.0
    %116 = vmatprep.subr.mxu0 0.0
    %117 = vmatpush1.msra.mxu0 0.0
    %118 = vmatprep.subr.mxu0 0.0
    %119 = vmatpush1.msra.mxu0 0.0
    %120 = vmatprep.subr.mxu0 0.0
    %121 = vmatpush1.msra.mxu0 0.0
    %122 = vmatprep.subr.mxu0 0.0
    %123 = vmatpush1.msra.mxu0 0.0
    %124 = vmatprep.subr.mxu0 0.0
    %125 = vmatpush1.msra.mxu0 0.0
    %126 = vmatprep.subr.mxu0 0.0
    %127 = vmatpush1.msra.mxu0 0.0
    %128 = vmatprep.subr.mxu0 0.0
    %129 = vmatpush1.msra.mxu0 0.0
    %130 = vmatprep.subr.mxu0 0.0
    %131 = vmatpush1.msra.mxu0 0.0
    %132 = vmatprep.subr.mxu0 0.0
    %133 = vmatpush1.msra.mxu0 0.0
    %134 = vmatprep.subr.mxu0 0.0
    %135 = vmatpush1.msra.mxu0 0.0
    %136 = vmatprep.subr.mxu0 0.0
    %137 = vmatpush1.msra.mxu0 0.0
    %138 = vmatprep.subr.mxu0 0.0
    %139 = vmatpush1.msra.mxu0 0.0
    %140 = vmatprep.subr.mxu0 0.0
    %141 = vmatpush1.msra.mxu0 0.0
    %142 = vmatprep.subr.mxu0 0.0
    %143 = vmatpush1.msra.mxu0 0.0
    %144 = vmatprep.subr.mxu0 0.0
    %145 = vmatpush1.msra.mxu0 0.0
    %146 = vmatprep.subr.mxu0 0.0
    %147 = vmatpush1.msra.mxu0 0.0
    %148 = vmatprep.subr.mxu0 0.0
    %149 = vmatpush1.msra.mxu0 0.0
    %150 = vmatprep.subr.mxu0 0.0
    %151 = vmatpush1.msra.mxu0 0.0
    %152 = vmatprep.subr.mxu0 0.0
    %153 = vmatpush1.msra.mxu0 0.0
    %154 = vmatprep.subr.mxu0 0.0
    %155 = vmatpush1.msra.mxu0 0.0
    %156 = vmatprep.subr.mxu0 0.0
    %157 = vmatpush1.msra.mxu0 0.0
    %158 = vmatprep.subr.mxu0 0.0
    %159 = vmatpush1.msra.mxu0 0.0
    %160 = vmatprep.subr.mxu0 0.0
    %161 = vmatpush1.msra.mxu0 0.0
    %162 = vmatprep.subr.mxu0 0.0
    %163 = vmatpush1.msra.mxu0 0.0
    %164 = vmatprep.subr.mxu0 0.0
    %165 = vmatpush1.msra.mxu0 0.0
    %166 = vmatprep.mubr.f32.mxu0 0.0
    %167 = vmatmul.mubr.f32.gmra.mrb[0].mxu0 %v97
    %v168 = vpop.f32.mrb[0].mxu0
    %v169 = vadd.f32 %v80, %v168
    %v170 = vpop.f32.mrb[0].mxu0
    %171 = vdwg.mxu0
    %vm172 = vcmask 25600
    %173 = vst.msk [vmem:[#allocation7] sm:$0x3] %vm172, %v169
    // Predicated region
    $region22: #{tpu_custom_call.1} parent=1 // pred_check
      _
    $region23: #{tpu_custom_call.1} parent=1 // pred_check_branch
      %175 = sbr.rel (0) target = $region25
    $region24: #{tpu_custom_call.1} parent=1 // pred_region
      %s177 = ssub.s32 32, 32
      %178 = vsyncadd [#allocation4], %s177
      %s180 = sshll.u32 [#allocation7], 4
      %s181 = int_to_ptr.vmem [resolvable:$true] %s180
      %183 = dma.vmem_to_hbm [thread:$0]  %s181, 32, %s3, [#allocation4]
    $region25: #{tpu_custom_call.1} parent=1 // pred_fallthru
      _
    // Predicated region
    $region26: #{tpu_custom_call.1} parent=1 // pred_check
      _
    $region27: #{tpu_custom_call.1} parent=1 // pred_check_branch
      %185 = sbr.rel (0) target = $region29
    $region28: #{tpu_custom_call.1} parent=1 // pred_region
      %186 = dma.done [#allocation4], 32
    $region29: #{tpu_custom_call.1} parent=1 // pred_fallthru
      _
    %187 = vsyncpa [#allocation3], 1
    %188 = vsyncpa [#allocation6], 1
    %189 = vsyncpa [#allocation4], 1

</llo_original>
